<compile_context>
chip_gen: v7x
topology: tpu7x:2x2x1
jax: 0.10.0
libtpu: 0.0.40
codegen_flags: <defaults>
</compile_context>

<pallas_src>
import jax
import jax.numpy as jnp
from jax import lax
from jax.experimental import pallas as pl
from jax.experimental.pallas import tpu as pltpu


def feature_tokens_kernel(x_ref, wa_ref, wv_ref, bias_ref, o_ref):
    # x_ref   : (1, C, HW)   one batch element, channels on sublanes, HW on lanes
    # wa_ref  : (T, C)       token_wA[0]  (original, un-rearranged layout)
    # wv_ref  : (C, D)       token_wV[0]
    # bias_ref: (T+1, D)     row 0 = cls_token + pos[0]; rows 1.. = pos[1:]
    # o_ref   : (1, T+1, D)
    n_tok = wa_ref.shape[0]

    xc = x_ref[0]                                              # (C, HW)

    # A (already in the "rearranged" (T, HW) orientation of the PyTorch code).
    logits = jnp.dot(wa_ref[...], xc,
                     preferred_element_type=jnp.float32)       # (T, HW)

    # softmax over HW (lane axis), f32.
    logits = logits - jnp.max(logits, axis=-1, keepdims=True)
    p = jnp.exp(logits)
    attn = p / jnp.sum(p, axis=-1, keepdims=True)              # (T, HW)

    # T = (A @ X) @ wV ; A @ X == dot_general contracting the HW (last) dims.
    ax = lax.dot_general(attn, xc,
                         dimension_numbers=(((1,), (1,)), ((), ())),
                         preferred_element_type=jnp.float32)   # (T, C)
    t = jnp.dot(ax, wv_ref[...],
                preferred_element_type=jnp.float32)            # (T, D)

    # Row 0: cls_token + pos[0] (no data dependence on x); rows 1..T: T + pos.
    o_ref[0, pl.ds(0, 1), :] = bias_ref[pl.ds(0, 1), :].astype(o_ref.dtype)
    o_ref[0, pl.ds(1, n_tok), :] = (
        t + bias_ref[pl.ds(1, n_tok), :]).astype(o_ref.dtype)


def feature_tokens_pallas(x, cls_token, token_wA, token_wV, pos_emb):
    """x: (B, C, H, W) with C == 64; params in PyTorch shapes:
       cls_token (1,1,FM*4), token_wA (1,FM*2,64), token_wV (1,64,64),
       pos_emb (1, FM*2+1, FM*4)."""
    B, C, H, W = x.shape
    HW = H * W
    n_tok = token_wA.shape[1]          # FM*2
    D = pos_emb.shape[2]               # FM*4 (== 64 == C)

    x_flat = x.reshape(B, C, HW)       # free reshape (H, W contiguous)
    wa = token_wA[0]                   # (T, C)
    wv = token_wV[0]                   # (C, D)
    # Fold cls_token into the positional-embedding row 0 -> single bias tensor.
    bias = pos_emb[0].at[0].add(cls_token[0, 0])   # (T+1, D)

    out = pl.pallas_call(
        feature_tokens_kernel,
        out_shape=jax.ShapeDtypeStruct((B, n_tok + 1, D), x.dtype),
        grid_spec=pltpu.PrefetchScalarGridSpec(
            num_scalar_prefetch=0,
            grid=(B,),
            in_specs=[
                pl.BlockSpec((1, C, HW), lambda b: (b, 0, 0)),
                pl.BlockSpec((n_tok, C), lambda b: (0, 0)),
                pl.BlockSpec((C, D), lambda b: (0, 0)),
                pl.BlockSpec((n_tok + 1, D), lambda b: (0, 0)),
            ],
            out_specs=pl.BlockSpec((1, n_tok + 1, D), lambda b: (b, 0, 0)),
        ),
        compiler_params=pltpu.CompilerParams(
            dimension_semantics=("parallel",)),
    )(x_flat, wa, wv, bias)
    return out


def feature_tokens_reference(x, cls_token, token_wA, token_wV, pos_emb):
    """Pure-JAX reference matching the PyTorch forward literally (eval mode)."""
    B, C, H, W = x.shape
    xf = jnp.transpose(x.reshape(B, C, H * W), (0, 2, 1))        # (B, HW, C)
    wa = jnp.transpose(
        jnp.broadcast_to(token_wA, (B,) + token_wA.shape[1:]),
        (0, 2, 1))                                               # (B, 64, T)
    A = jnp.einsum('bij,bjk->bik', xf, wa)                       # (B, HW, T)
    A = jnp.transpose(A, (0, 2, 1))                              # (B, T, HW)
    A = jax.nn.softmax(A, axis=-1)
    wv = jnp.broadcast_to(token_wV, (B,) + token_wV.shape[1:])   # (B, 64, 64)
    VV = jnp.einsum('bij,bjk->bik', xf, wv)                      # (B, HW, 64)
    T = jnp.einsum('bij,bjk->bik', A, VV)                        # (B, T, 64)
    cls = jnp.broadcast_to(cls_token, (B,) + cls_token.shape[1:])
    out = jnp.concatenate([cls, T], axis=1) + pos_emb
    return out                                                   # dropout = identity


if __name__ == "__main__":
    # Shapes implied by the module: the einsum contraction forces C = 64 and the
    # concat forces FM*4 = 64, i.e. FM = 16 -> 32 tokens + 1 cls, embed dim 64.
    FM = 16
    B, C, H, W = 2, 64, 8, 8
    n_tok, D = FM * 2, FM * 4

    key = jax.random.PRNGKey(0)
    kx, kc, ka, kv, kp = jax.random.split(key, 5)
    x = jax.random.normal(kx, (B, C, H, W), jnp.float32)
    cls_token = jax.random.normal(kc, (1, 1, D), jnp.float32) * 0.1
    token_wA = jax.random.normal(ka, (1, n_tok, 64), jnp.float32) * 0.1
    token_wV = jax.random.normal(kv, (1, 64, 64), jnp.float32) * 0.1
    pos_emb = jax.random.normal(kp, (1, n_tok + 1, D), jnp.float32) * 0.1

    out = feature_tokens_pallas(x, cls_token, token_wA, token_wV, pos_emb)
    out = jax.block_until_ready(out)

    ref = feature_tokens_reference(x, cls_token, token_wA, token_wV, pos_emb)
    ref = jax.block_until_ready(ref)

    assert out.shape == (B, n_tok + 1, D), out.shape
    assert jnp.allclose(out, ref, atol=1e-4, rtol=1e-4), (
        float(jnp.max(jnp.abs(out - ref))))

    print("KERNEL_OK")
</pallas_src>

<mosaic_0001>
module attributes {stable_mosaic.version = 11 : i64} {
  func.func @feature_tokens_kernel(%arg0: i32, %arg1: memref<1x64x64xf32, #tpu.memory_space<vmem>>, %arg2: memref<32x64xf32, #tpu.memory_space<vmem>>, %arg3: memref<64x64xf32, #tpu.memory_space<vmem>>, %arg4: memref<33x64xf32, #tpu.memory_space<vmem>>, %arg5: memref<1x33x64xf32, #tpu.memory_space<vmem>>) attributes {dimension_semantics = [#tpu.dimension_semantics<parallel>], iteration_bounds = array<i64: 2>, scalar_prefetch = 0 : i64, scratch_operands = 0 : i64, tpu.core_type = #tpu.core_type<tc>, window_params = [{transform_indices = @transform_0, window_bounds = array<i64: 1, 64, 64>}, {pipeline_mode = #tpu.pipeline_mode<synchronous>, transform_indices = @transform_1, window_bounds = array<i64: 32, 64>}, {pipeline_mode = #tpu.pipeline_mode<synchronous>, transform_indices = @transform_2, window_bounds = array<i64: 64, 64>}, {pipeline_mode = #tpu.pipeline_mode<synchronous>, transform_indices = @transform_3, window_bounds = array<i64: 33, 64>}, {transform_indices = @transform_4, window_bounds = array<i64: 1, 33, 64>}]} {
    %c0 = arith.constant 0 : index
    %c0_0 = arith.constant 0 : index
    %c0_1 = arith.constant 0 : index
    %0 = vector.load %arg1[%c0, %c0_0, %c0_1] : memref<1x64x64xf32, #tpu.memory_space<vmem>>, vector<1x64x64xf32>
    %1 = vector.shape_cast %0 : vector<1x64x64xf32> to vector<64x64xf32>
    %c0_2 = arith.constant 0 : index
    %c0_3 = arith.constant 0 : index
    %2 = vector.load %arg2[%c0_2, %c0_3] : memref<32x64xf32, #tpu.memory_space<vmem>>, vector<32x64xf32>
    %cst = arith.constant dense<0.000000e+00> : vector<32x64xf32>
    %3 = tpu.matmul %2, %1, %cst {dimension_numbers = #tpu.dot_dimension_numbers<[1], [0], [0], [1], [0, 0, 1, 1], [], []>} : vector<32x64xf32>, vector<64x64xf32>, vector<32x64xf32> -> vector<32x64xf32>
    %cst_4 = arith.constant dense<0xFF800000> : vector<32xf32>
    %4 = vector.multi_reduction <maximumf>, %3, %cst_4 [1] : vector<32x64xf32> to vector<32xf32>
    %5 = vector.shape_cast %4 : vector<32xf32> to vector<32x1xf32>
    %6 = vector.broadcast %5 : vector<32x1xf32> to vector<32x64xf32>
    %7 = arith.subf %3, %6 : vector<32x64xf32>
    %8 = math.exp %7 : vector<32x64xf32>
    %cst_5 = arith.constant dense<0.000000e+00> : vector<32xf32>
    %9 = vector.multi_reduction <add>, %8, %cst_5 [1] : vector<32x64xf32> to vector<32xf32>
    %10 = vector.shape_cast %9 : vector<32xf32> to vector<32x1xf32>
    %11 = vector.broadcast %10 : vector<32x1xf32> to vector<32x64xf32>
    %12 = arith.divf %8, %11 : vector<32x64xf32>
    %cst_6 = arith.constant dense<0.000000e+00> : vector<32x64xf32>
    %13 = tpu.matmul %12, %1, %cst_6 {dimension_numbers = #tpu.dot_dimension_numbers<[1], [1], [0], [0], [0, 0, 1, 0], [], []>} : vector<32x64xf32>, vector<64x64xf32>, vector<32x64xf32> -> vector<32x64xf32>
    %c0_7 = arith.constant 0 : index
    %c0_8 = arith.constant 0 : index
    %14 = vector.load %arg3[%c0_7, %c0_8] : memref<64x64xf32, #tpu.memory_space<vmem>>, vector<64x64xf32>
    %cst_9 = arith.constant dense<0.000000e+00> : vector<32x64xf32>
    %15 = tpu.matmul %13, %14, %cst_9 {dimension_numbers = #tpu.dot_dimension_numbers<[1], [0], [0], [1], [0, 0, 1, 1], [], []>} : vector<32x64xf32>, vector<64x64xf32>, vector<32x64xf32> -> vector<32x64xf32>
    %c0_10 = arith.constant 0 : index
    %c0_11 = arith.constant 0 : index
    %16 = vector.load %arg4[%c0_10, %c0_11] : memref<33x64xf32, #tpu.memory_space<vmem>>, vector<1x64xf32>
    %c0_12 = arith.constant 0 : index
    %c0_13 = arith.constant 0 : index
    %c0_14 = arith.constant 0 : index
    %17 = vector.load %arg5[%c0_12, %c0_13, %c0_14] : memref<1x33x64xf32, #tpu.memory_space<vmem>>, vector<1x1x64xf32>
    %18 = vector.shape_cast %17 : vector<1x1x64xf32> to vector<1x64xf32>
    %19 = vector.shape_cast %16 : vector<1x64xf32> to vector<1x1x64xf32>
    tpu.vector_store %arg5[%c0_12, %c0_13, %c0_14], %19 {strides = array<i32>} : memref<1x33x64xf32, #tpu.memory_space<vmem>>, vector<1x1x64xf32>,
    %c1 = arith.constant 1 : index
    %c0_15 = arith.constant 0 : index
    %20 = vector.load %arg4[%c1, %c0_15] : memref<33x64xf32, #tpu.memory_space<vmem>>, vector<32x64xf32>
    %21 = arith.addf %15, %20 : vector<32x64xf32>
    %c0_16 = arith.constant 0 : index
    %c1_17 = arith.constant 1 : index
    %c0_18 = arith.constant 0 : index
    %22 = vector.load %arg5[%c0_16, %c1_17, %c0_18] : memref<1x33x64xf32, #tpu.memory_space<vmem>>, vector<1x32x64xf32>
    %23 = vector.shape_cast %22 : vector<1x32x64xf32> to vector<32x64xf32>
    %24 = vector.shape_cast %21 : vector<32x64xf32> to vector<1x32x64xf32>
    tpu.vector_store %arg5[%c0_16, %c1_17, %c0_18], %24 {strides = array<i32>} : memref<1x33x64xf32, #tpu.memory_space<vmem>>, vector<1x32x64xf32>,
    return
  }
  func.func @transform_0(%arg0: i32) -> (i32, i32, i32) {
    %c0_i32 = arith.constant 0 : i32
    %c0_i32_0 = arith.constant 0 : i32
    %c0_i32_1 = arith.constant 0 : i32
    return %arg0, %c0_i32, %c0_i32_0 : i32, i32, i32
  }
  func.func @transform_1(%arg0: i32) -> (i32, i32) {
    %c0_i32 = arith.constant 0 : i32
    %c0_i32_0 = arith.constant 0 : i32
    %c0_i32_1 = arith.constant 0 : i32
    return %c0_i32, %c0_i32_0 : i32, i32
  }
  func.func @transform_2(%arg0: i32) -> (i32, i32) {
    %c0_i32 = arith.constant 0 : i32
    %c0_i32_0 = arith.constant 0 : i32
    %c0_i32_1 = arith.constant 0 : i32
    return %c0_i32, %c0_i32_0 : i32, i32
  }
  func.func @transform_3(%arg0: i32) -> (i32, i32) {
    %c0_i32 = arith.constant 0 : i32
    %c0_i32_0 = arith.constant 0 : i32
    %c0_i32_1 = arith.constant 0 : i32
    return %c0_i32, %c0_i32_0 : i32, i32
  }
  func.func @transform_4(%arg0: i32) -> (i32, i32, i32) {
    %c0_i32 = arith.constant 0 : i32
    %c0_i32_0 = arith.constant 0 : i32
    %c0_i32_1 = arith.constant 0 : i32
    return %arg0, %c0_i32, %c0_i32_0 : i32, i32, i32
  }
}

</mosaic_0001>

<llo_original>
// kernel: tpu_custom_call.1
$region0: #{tpu_custom_call.1}
  #allocation0 [shape = 'u32[]', space=smem, size = 0x4, offset = 0x4, fixed_abs, tag = 'smem constant byte address 0x4 - core index']
  #allocation1 [shape = 'u32[144,128]{1,0:T(1,128)}', space=vmem, size = 0x12000, scoped, tag = 'internal scratch']
  %s0 = inlined_call_operand.hbm [shape: f32[2,64,64], index: 0, kind: input, shape index: {}]
  %s1 = inlined_call_operand.hbm [shape: f32[32,64], index: 1, kind: input, shape index: {}]
  %s2 = inlined_call_operand.hbm [shape: f32[64,64], index: 2, kind: input, shape index: {}]
  %s3 = inlined_call_operand.hbm [shape: f32[33,64], index: 3, kind: input, shape index: {}]
  %s4 = inlined_call_operand.vmem [shape: f32[2,33,64], index: 4, kind: output, shape index: {}]
  %s5 = sld [smem:[#allocation0]]
  $region65: #{tpu_custom_call.1} parent=0
    _
  %s7 = ssub.s32 1, %s5
  %s8 = scalar_select 0, %s7, %s5
  $region1: #{tpu_custom_call.1} parent=0
    #allocation2 [shape = 'u8[65536]{0}', space=vmem, size = 0x10000, scoped, tag = 'input window, operand 0']
    #allocation3 [shape = 's32[2]{0}', space=sflag, size = 0x8, scoped, tag = 'scoped memory for tpu_custom_call.1']
    #allocation4 [shape = 'u8[16384]{0}', space=vmem, size = 0x4000, scoped, tag = 'input window, operand 1, single buffered']
    #allocation5 [shape = 's32[1]{0}', space=sflag, size = 0x4, scoped, tag = 'scoped memory for tpu_custom_call.1']
    #allocation6 [shape = 'u8[32768]{0}', space=vmem, size = 0x8000, scoped, tag = 'input window, operand 2, single buffered']
    #allocation7 [shape = 'u8[20480]{0}', space=vmem, size = 0x5000, scoped, tag = 'input window, operand 3, single buffered']
    #allocation8 [shape = 's32[1]{0}', space=sflag, size = 0x4, scoped, tag = 'scoped memory for tpu_custom_call.1']
    %9 = vsyncpa [#allocation3], 0
    %s10 = scalar_lea.sflag [#allocation3], 1
    %11 = vsyncpa %s10, 0
    %12 = vsyncpa [#allocation5], 0
    %13 = vsyncpa [#allocation8], 0
    loop: start=0, step=1, limit=4
    $region2: #{tpu_custom_call.1} parent=1 // loop_pre_header
      _
    $region3: #{tpu_custom_call.1} parent=1 // loop_header
      %s15 = sphi 0, %s19
      %p16 = scmp.ge.s32.totalorder %s15, 4
      %s25 = sphi 0, %s27
      %s28 = sphi 0, %s25
      %s29 = sphi 0, %s28
      %s45 = sphi 0, %s29
      %s49 = sphi 0, %s49
      %s51 = sphi 0, %s49
      %s52 = sphi 0, %s51
      %s66 = sphi 0, %s52
      %s70 = sphi 0, %s70
      %s72 = sphi 0, %s70
      %s73 = sphi 0, %s72
      %s87 = sphi 0, %s73
      %s91 = sphi 0, %s91
      %s93 = sphi 0, %s91
      %s94 = sphi 0, %s93
      %s108 = sphi 0, %s94
      %s114 = sphi 0, %s116
      %s117 = sphi 0, %s114
      %s118 = sphi 0, %s117
      %s134 = sphi 0, %s118
    $region4: #{tpu_custom_call.1} parent=1 // loop_header_branch
      %18 = sbr.rel (%p16) target = $region8
    $region5: #{tpu_custom_call.1} parent=1 // loop_body
      %s20 = ssub.s32 %s15, 1
      %s21 = ssub.s32 %s15, 2
      %s22 = sadd.s32 %s15, 1
      %s23 = ssub.s32 %s15, %s22
      %p24 = scmp.eq.s32.totalorder %s23, 0
      %s26 = sadd.s32 %s25, 1
      %s27 = scalar_select %p24, %s25, %s26
      %p30 = pneg %p24
      %p31 = scmp.eq.s32.totalorder %s15, 1
      %p32 = por %p30, %p31
      %p33 = scmp.ne.s32.totalorder %s25, %s28
      %p34 = scmp.eq.s32.totalorder %s15, 0
      %p35 = por %p33, %p34
      %p36 = scmp.ne.s32.totalorder %s25, %s28
      %p37 = scmp.eq.s32.totalorder %s20, 1
      %p38 = por %p36, %p37
      %p39 = scmp.ne.s32.totalorder %s28, %s29
      %p40 = scmp.eq.s32.totalorder %s20, 0
      %p41 = por %p39, %p40
      %p42 = scmp.ne.s32.totalorder %s28, %s29
      %p43 = scmp.eq.s32.totalorder %s21, 1
      %p44 = por %p42, %p43
      %p46 = scmp.ne.s32.totalorder %s29, %s45
      %p47 = scmp.eq.s32.totalorder %s21, 0
      %p48 = por %p46, %p47
      %s50 = sadd.s32 %s49, 1
      %p53 = scmp.eq.s32.totalorder %s15, 1
      %p54 = scmp.ne.s32.totalorder %s49, %s51
      %p55 = scmp.eq.s32.totalorder %s15, 0
      %p56 = por %p54, %p55
      %p57 = scmp.ne.s32.totalorder %s49, %s51
      %p58 = scmp.eq.s32.totalorder %s20, 1
      %p59 = por %p57, %p58
      %p60 = scmp.ne.s32.totalorder %s51, %s52
      %p61 = scmp.eq.s32.totalorder %s20, 0
      %p62 = por %p60, %p61
      %p63 = scmp.ne.s32.totalorder %s51, %s52
      %p64 = scmp.eq.s32.totalorder %s21, 1
      %p65 = por %p63, %p64
      %p67 = scmp.ne.s32.totalorder %s52, %s66
      %p68 = scmp.eq.s32.totalorder %s21, 0
      %p69 = por %p67, %p68
      %s71 = sadd.s32 %s70, 1
      %p74 = scmp.eq.s32.totalorder %s15, 1
      %p75 = scmp.ne.s32.totalorder %s70, %s72
      %p76 = scmp.eq.s32.totalorder %s15, 0
      %p77 = por %p75, %p76
      %p78 = scmp.ne.s32.totalorder %s70, %s72
      %p79 = scmp.eq.s32.totalorder %s20, 1
      %p80 = por %p78, %p79
      %p81 = scmp.ne.s32.totalorder %s72, %s73
      %p82 = scmp.eq.s32.totalorder %s20, 0
      %p83 = por %p81, %p82
      %p84 = scmp.ne.s32.totalorder %s72, %s73
      %p85 = scmp.eq.s32.totalorder %s21, 1
      %p86 = por %p84, %p85
      %p88 = scmp.ne.s32.totalorder %s73, %s87
      %p89 = scmp.eq.s32.totalorder %s21, 0
      %p90 = por %p88, %p89
      %s92 = sadd.s32 %s91, 1
      %p95 = scmp.eq.s32.totalorder %s15, 1
      %p96 = scmp.ne.s32.totalorder %s91, %s93
      %p97 = scmp.eq.s32.totalorder %s15, 0
      %p98 = por %p96, %p97
      %p99 = scmp.ne.s32.totalorder %s91, %s93
      %p100 = scmp.eq.s32.totalorder %s20, 1
      %p101 = por %p99, %p100
      %p102 = scmp.ne.s32.totalorder %s93, %s94
      %p103 = scmp.eq.s32.totalorder %s20, 0
      %p104 = por %p102, %p103
      %p105 = scmp.ne.s32.totalorder %s93, %s94
      %p106 = scmp.eq.s32.totalorder %s21, 1
      %p107 = por %p105, %p106
      %p109 = scmp.ne.s32.totalorder %s94, %s108
      %p110 = scmp.eq.s32.totalorder %s21, 0
      %p111 = por %p109, %p110
      %s112 = ssub.s32 %s15, %s22
      %p113 = scmp.eq.s32.totalorder %s112, 0
      %s115 = sadd.s32 %s114, 1
      %s116 = scalar_select %p113, %s114, %s115
      %p119 = pneg %p113
      %p120 = scmp.eq.s32.totalorder %s15, 1
      %p121 = por %p119, %p120
      %p122 = scmp.ne.s32.totalorder %s114, %s117
      %p123 = scmp.eq.s32.totalorder %s15, 0
      %p124 = por %p122, %p123
      %p125 = scmp.ne.s32.totalorder %s114, %s117
      %p126 = scmp.eq.s32.totalorder %s20, 1
      %p127 = por %p125, %p126
      %p128 = scmp.ne.s32.totalorder %s117, %s118
      %p129 = scmp.eq.s32.totalorder %s20, 0
      %p130 = por %p128, %p129
      %p131 = scmp.ne.s32.totalorder %s117, %s118
      %p132 = scmp.eq.s32.totalorder %s21, 1
      %p133 = por %p131, %p132
      %p135 = scmp.ne.s32.totalorder %s118, %s134
      %p136 = scmp.eq.s32.totalorder %s21, 0
      %p137 = por %p135, %p136
      %p138 = scmp.le.s32.totalorder 1, %s15
      %p139 = scmp.lt.s32.totalorder %s15, 3
      %p140 = pnand %p138, %p139
      %p141 = pneg %p140
      // Predicated region
      $region9: #{tpu_custom_call.1} parent=5 // pred_check
        _
      $region10: #{tpu_custom_call.1} parent=5 // pred_check_branch
        %143 = sbr.rel (%p140) target = $region12
      $region11: #{tpu_custom_call.1} parent=5 // pred_region
        %s144 = ssub.s32 %s15, 1
        // Predicated region
        $region13: #{tpu_custom_call.1} parent=11 // pred_check
          %p145 = pneg %p62
        $region14: #{tpu_custom_call.1} parent=11 // pred_check_branch
          %147 = sbr.rel (%p145) target = $region16
        $region15: #{tpu_custom_call.1} parent=11 // pred_region
          %s149 = ssub.s32 512, 512
          %150 = vsyncadd [#allocation5], %s149
          %s151 = sshll.u32 [#allocation4], 4
          %s152 = int_to_ptr.vmem [resolvable:$true] %s151
          %157 = dma.hbm_to_vmem [thread:$0]  %s1, 512, %s152, [#allocation5], 128, 128, 8
        $region16: #{tpu_custom_call.1} parent=11 // pred_fallthru
          _
        // Predicated region
        $region17: #{tpu_custom_call.1} parent=11 // pred_check
          %p158 = pneg %p83
        $region18: #{tpu_custom_call.1} parent=11 // pred_check_branch
          %160 = sbr.rel (%p158) target = $region20
        $region19: #{tpu_custom_call.1} parent=11 // pred_region
          %s162 = ssub.s32 1024, 1024
          %163 = vsyncadd [#allocation5], %s162
          %s164 = sshll.u32 [#allocation6], 4
          %s165 = int_to_ptr.vmem [resolvable:$true] %s164
          %170 = dma.hbm_to_vmem [thread:$0]  %s2, 1024, %s165, [#allocation5], 128, 128, 8
        $region20: #{tpu_custom_call.1} parent=11 // pred_fallthru
          _
        // Predicated region
        $region21: #{tpu_custom_call.1} parent=11 // pred_check
          %p171 = pneg %p104
        $region22: #{tpu_custom_call.1} parent=11 // pred_check_branch
          %173 = sbr.rel (%p171) target = $region24
        $region23: #{tpu_custom_call.1} parent=11 // pred_region
          %s175 = ssub.s32 640, 640
          %176 = vsyncadd [#allocation8], %s175
          %s177 = sshll.u32 [#allocation7], 4
          %s178 = int_to_ptr.vmem [resolvable:$true] %s177
          %183 = dma.hbm_to_vmem [thread:$0]  %s3, 640, %s178, [#allocation8], 128, 128, 8
        $region24: #{tpu_custom_call.1} parent=11 // pred_fallthru
          _
      $region12: #{tpu_custom_call.1} parent=5 // pred_fallthru
        _
      %p184 = scmp.lt.s32.totalorder %s15, 2
      // Predicated region
      $region25: #{tpu_custom_call.1} parent=5 // pred_check
        %p185 = pneg %p184
      $region26: #{tpu_custom_call.1} parent=5 // pred_check_branch
        %187 = sbr.rel (%p185) target = $region28
      $region27: #{tpu_custom_call.1} parent=5 // pred_region
        // Predicated region
        $region29: #{tpu_custom_call.1} parent=27 // pred_check
          %p188 = pneg %p35
        $region30: #{tpu_custom_call.1} parent=27 // pred_check_branch
          %190 = sbr.rel (%p188) target = $region32
        $region31: #{tpu_custom_call.1} parent=27 // pred_region
          %s191 = sand.u32 %s25, 1
          %s192 = scalar_lea.sflag [#allocation3], %s191
          %s193 = sand.u32 %s25, 1
          %s194 = smul.addr %s193, 64
          %s195 = scalar_lea.vmem [#allocation2], %s194
          %s197 = ssub.s32 1024, 1024
          %198 = vsyncadd %s192, %s197
          %s199 = smul.addr %s15, 8
          %s200 = smul.addr %s199, 128
          %s201 = scalar_lea.hbm %s0, %s200
          %s202 = sshll.u32 %s195, 4
          %s203 = int_to_ptr.vmem [resolvable:$true] %s202
          %208 = dma.hbm_to_vmem [thread:$0]  %s201, 1024, %s203, %s192, 128, 128, 8
        $region32: #{tpu_custom_call.1} parent=27 // pred_fallthru
          _
      $region28: #{tpu_custom_call.1} parent=5 // pred_fallthru
        _
      %p209 = scmp.le.s32.totalorder 1, %s15
      %p210 = scmp.lt.s32.totalorder %s15, 3
      %p211 = pnand %p209, %p210
      %p212 = pneg %p211
      // Predicated region
      $region33: #{tpu_custom_call.1} parent=5 // pred_check
        _
      $region34: #{tpu_custom_call.1} parent=5 // pred_check_branch
        %214 = sbr.rel (%p211) target = $region36
      $region35: #{tpu_custom_call.1} parent=5 // pred_region
        %s215 = ssub.s32 %s15, 1
        %s216 = sand.u32 %s28, 1
        %s217 = scalar_lea.sflag [#allocation3], %s216
        %s218 = sand.u32 %s28, 1
        %s219 = smul.addr %s218, 64
        %s220 = scalar_lea.vmem [#allocation2], %s219
        // Predicated region
        $region37: #{tpu_custom_call.1} parent=35 // pred_check
          %p221 = pneg %p41
        $region38: #{tpu_custom_call.1} parent=35 // pred_check_branch
          %223 = sbr.rel (%p221) target = $region40
        $region39: #{tpu_custom_call.1} parent=35 // pred_region
          %224 = dma.done %s217, 1024
        $region40: #{tpu_custom_call.1} parent=35 // pred_fallthru
          _
        // Predicated region
        $region41: #{tpu_custom_call.1} parent=35 // pred_check
          %p225 = pneg %p62
        $region42: #{tpu_custom_call.1} parent=35 // pred_check_branch
          %227 = sbr.rel (%p225) target = $region44
        $region43: #{tpu_custom_call.1} parent=35 // pred_region
          %228 = dma.done [#allocation5], 512
        $region44: #{tpu_custom_call.1} parent=35 // pred_fallthru
          _
        // Predicated region
        $region45: #{tpu_custom_call.1} parent=35 // pred_check
          %p229 = pneg %p83
        $region46: #{tpu_custom_call.1} parent=35 // pred_check_branch
          %231 = sbr.rel (%p229) target = $region48
        $region47: #{tpu_custom_call.1} parent=35 // pred_region
          %232 = dma.done [#allocation5], 1024
        $region48: #{tpu_custom_call.1} parent=35 // pred_fallthru
          _
        // Predicated region
        $region49: #{tpu_custom_call.1} parent=35 // pred_check
          %p233 = pneg %p104
        $region50: #{tpu_custom_call.1} parent=35 // pred_check_branch
          %235 = sbr.rel (%p233) target = $region52
        $region51: #{tpu_custom_call.1} parent=35 // pred_region
          %236 = dma.done [#allocation8], 640
        $region52: #{tpu_custom_call.1} parent=35 // pred_fallthru
          _
        %s237 = sand.u32 %s28, 1
        %s238 = scalar_lea.sflag [#allocation3], %s237
        %s239 = sand.u32 %s28, 1
        %s240 = smul.addr %s239, 64
        %s241 = scalar_lea.vmem [#allocation2], %s240
        %p242 = pneg %p41
        %p243 = pneg %p38
        %p244 = pneg %p62
        %p245 = pneg %p59
        %p246 = pneg %p83
        %p247 = pneg %p80
        %p248 = pneg %p104
        %p249 = pneg %p101
        %p250 = pneg %p130
        %p251 = pneg %p127
        %p252 = scmp.lt.s32.totalorder %s20, 1
        %s253 = scalar_select %p252, %s20, 1
        %s254 = smul.addr %s253, 5
        %s255 = smul.addr %s254, 8
        %s256 = scalar_lea.vmem %s4, %s255
        %p257 = scmp.lt.s32.totalorder %s20, 1
        %s258 = scalar_select %p257, %s20, 1
        %s259 = smul.addr %s258, 5
        %s260 = smul.addr %s259, 8
        %s261 = scalar_lea.vmem %s4, %s260
        %v262 = vld [vmem:[%s220] sm:$0xff]
        %v263 = vld [vmem:[%s220 + $0x8] sm:$0xff]
        %v264 = vld [vmem:[%s220 + $0x10] sm:$0xff]
        %v265 = vld [vmem:[%s220 + $0x18] sm:$0xff]
        %v266 = vld [vmem:[%s220 + $0x20] sm:$0xff]
        %v267 = vld [vmem:[%s220 + $0x28] sm:$0xff]
        %v268 = vld [vmem:[%s220 + $0x30] sm:$0xff]
        %v269 = vld [vmem:[%s220 + $0x38] sm:$0xff]
        %v270 = vld [vmem:[#allocation4] sm:$0xff]
        %v271 = vld [vmem:[#allocation4 + $0x8] sm:$0xff]
        %v272 = vld [vmem:[#allocation4 + $0x10] sm:$0xff]
        %v273 = vld [vmem:[#allocation4 + $0x18] sm:$0xff]
        %vm274 = vcmask 523264
        %v276 = vsel %vm274, %v270, 0
        %v279 = vsel %vm274, %v271, 0
        %v282 = vsel %vm274, %v272, 0
        %v285 = vsel %vm274, %v273, 0
        %287 = vmatprep.subr.mxu0 0.0
        %288 = vmatpush1.msra.mxu0 %v262
        %289 = vmatprep.subr.mxu0 0.0
        %290 = vmatpush1.msra.mxu0 %v263
        %291 = vmatprep.subr.mxu0 0.0
        %292 = vmatpush1.msra.mxu0 %v264
        %293 = vmatprep.subr.mxu0 0.0
        %294 = vmatpush1.msra.mxu0 %v265
        %295 = vmatprep.subr.mxu0 0.0
        %296 = vmatpush1.msra.mxu0 %v266
        %297 = vmatprep.subr.mxu0 0.0
        %298 = vmatpush1.msra.mxu0 %v267
        %299 = vmatprep.subr.mxu0 0.0
        %300 = vmatpush1.msra.mxu0 %v268
        %301 = vmatprep.subr.mxu0 0.0
        %302 = vmatpush1.msra.mxu0 %v269
        %303 = vmatprep.subr.mxu0 0.0
        %304 = vmatpush1.msra.mxu0 0.0
        %305 = vmatprep.subr.mxu0 0.0
        %306 = vmatpush1.msra.mxu0 0.0
        %307 = vmatprep.subr.mxu0 0.0
        %308 = vmatpush1.msra.mxu0 0.0
        %309 = vmatprep.subr.mxu0 0.0
        %310 = vmatpush1.msra.mxu0 0.0
        %311 = vmatprep.subr.mxu0 0.0
        %312 = vmatpush1.msra.mxu0 0.0
        %313 = vmatprep.subr.mxu0 0.0
        %314 = vmatpush1.msra.mxu0 0.0
        %315 = vmatprep.subr.mxu0 0.0
        %316 = vmatpush1.msra.mxu0 0.0
        %317 = vmatprep.subr.mxu0 0.0
        %318 = vmatpush1.msra.mxu0 0.0
        %319 = vmatprep.subr.mxu0 0.0
        %320 = vmatpush1.msra.mxu0 0.0
        %321 = vmatprep.subr.mxu0 0.0
        %322 = vmatpush1.msra.mxu0 0.0
        %323 = vmatprep.subr.mxu0 0.0
        %324 = vmatpush1.msra.mxu0 0.0
        %325 = vmatprep.subr.mxu0 0.0
        %326 = vmatpush1.msra.mxu0 0.0
        %327 = vmatprep.subr.mxu0 0.0
        %328 = vmatpush1.msra.mxu0 0.0
        %329 = vmatprep.subr.mxu0 0.0
        %330 = vmatpush1.msra.mxu0 0.0
        %331 = vmatprep.subr.mxu0 0.0
        %332 = vmatpush1.msra.mxu0 0.0
        %333 = vmatprep.subr.mxu0 0.0
        %334 = vmatpush1.msra.mxu0 0.0
        %335 = vmatprep.subr.mxu0 0.0
        %336 = vmatpush1.msra.mxu0 0.0
        %337 = vmatprep.subr.mxu0 0.0
        %338 = vmatpush1.msra.mxu0 0.0
        %339 = vmatprep.subr.mxu0 0.0
        %340 = vmatpush1.msra.mxu0 0.0
        %341 = vmatprep.subr.mxu0 0.0
        %342 = vmatpush1.msra.mxu0 0.0
        %343 = vmatprep.subr.mxu0 0.0
        %344 = vmatpush1.msra.mxu0 0.0
        %345 = vmatprep.subr.mxu0 0.0
        %346 = vmatpush1.msra.mxu0 0.0
        %347 = vmatprep.subr.mxu0 0.0
        %348 = vmatpush1.msra.mxu0 0.0
        %349 = vmatprep.subr.mxu0 0.0
        %350 = vmatpush1.msra.mxu0 0.0
        %351 = vmatprep.mubr.f32.mxu0 0.0
        %352 = vmatmul.mubr.f32.gmra.mrb[0].mxu0 %v276
        %v353 = vpop.f32.mrb[0].mxu0
        %v354 = vadd.f32 0.0, %v353
        %v355 = vpop.f32.mrb[0].mxu0
        %356 = vmatprep.mubr.f32.mxu0 0.0
        %357 = vmatmul.mubr.f32.gmra.mrb[0].mxu0 %v279
        %v358 = vpop.f32.mrb[0].mxu0
        %v359 = vadd.f32 0.0, %v358
        %v360 = vpop.f32.mrb[0].mxu0
        %361 = vmatprep.mubr.f32.mxu0 0.0
        %362 = vmatmul.mubr.f32.gmra.mrb[0].mxu0 %v282
        %v363 = vpop.f32.mrb[0].mxu0
        %v364 = vadd.f32 0.0, %v363
        %v365 = vpop.f32.mrb[0].mxu0
        %366 = vmatprep.mubr.f32.mxu0 0.0
        %367 = vmatmul.mubr.f32.gmra.mrb[0].mxu0 %v285
        %v368 = vpop.f32.mrb[0].mxu0
        %v369 = vadd.f32 0.0, %v368
        %v370 = vpop.f32.mrb[0].mxu0
        %371 = vdwg.mxu0
        %v372 = vsel %vm274, %v354, -inf
        %373 = vmax.xlane.f32.xlu0 %v372
        %v374 = vpop.xlane.xlu0 %373
        %v375 = vsel %vm274, %v359, -inf
        %376 = vmax.xlane.f32.xlu0 %v375
        %v377 = vpop.xlane.xlu0 %376
        %v378 = vsel %vm274, %v364, -inf
        %379 = vmax.xlane.f32.xlu0 %v378
        %v380 = vpop.xlane.xlu0 %379
        %v381 = vsel %vm274, %v369, -inf
        %382 = vmax.xlane.f32.xlu0 %v381
        %v383 = vpop.xlane.xlu0 %382
        %v384 = vsub.f32 %v354, %v374
        %v385 = vsub.f32 %v359, %v377
        %v386 = vsub.f32 %v364, %v380
        %v387 = vsub.f32 %v369, %v383
        %v388 = vmul.f32 %v384, 1.442695
        %v389 = vpow.pop %v388
        %v390 = vmul.f32 %v385, 1.442695
        %v391 = vpow.pop %v390
        %v392 = vmul.f32 %v386, 1.442695
        %v393 = vpow.pop %v392
        %v394 = vmul.f32 %v387, 1.442695
        %v395 = vpow.pop %v394
        %v396 = vsel %vm274, %v389, 0.0
        %397 = vadd.xlane.f32.xlu0 %v396
        %v398 = vpop.xlane.xlu0 %397
        %v399 = vsel %vm274, %v391, 0.0
        %400 = vadd.xlane.f32.xlu0 %v399
        %v401 = vpop.xlane.xlu0 %400
        %v402 = vsel %vm274, %v393, 0.0
        %403 = vadd.xlane.f32.xlu0 %v402
        %v404 = vpop.xlane.xlu0 %403
        %v405 = vsel %vm274, %v395, 0.0
        %406 = vadd.xlane.f32.xlu0 %v405
        %v407 = vpop.xlane.xlu0 %406
        %v408 = vrcp.pop %v398
        %v409 = vmul.f32 %v389, %v408
        %v410 = vrcp.pop %v401
        %v411 = vmul.f32 %v391, %v410
        %v412 = vrcp.pop %v404
        %v413 = vmul.f32 %v393, %v412
        %v414 = vrcp.pop %v407
        %v415 = vmul.f32 %v395, %v414
        %v417 = vsel %vm274, %v409, 0
        %v420 = vsel %vm274, %v411, 0
        %v423 = vsel %vm274, %v413, 0
        %v426 = vsel %vm274, %v415, 0
        %v429 = vsel %vm274, %v262, 0
        %v432 = vsel %vm274, %v263, 0
        %v435 = vsel %vm274, %v264, 0
        %v438 = vsel %vm274, %v265, 0
        %v441 = vsel %vm274, %v266, 0
        %v444 = vsel %vm274, %v267, 0
        %v447 = vsel %vm274, %v268, 0
        %v450 = vsel %vm274, %v269, 0
        %452 = vmatprep.subr.mxu0 0.0
        %453 = vmatpush1.xpose.msra.mxu0 %v429
        %454 = vmatprep.subr.mxu0 0.0
        %455 = vmatpush1.xpose.msra.mxu0 %v432
        %456 = vmatprep.subr.mxu0 0.0
        %457 = vmatpush1.xpose.msra.mxu0 %v435
        %458 = vmatprep.subr.mxu0 0.0
        %459 = vmatpush1.xpose.msra.mxu0 %v438
        %460 = vmatprep.subr.mxu0 0.0
        %461 = vmatpush1.xpose.msra.mxu0 %v441
        %462 = vmatprep.subr.mxu0 0.0
        %463 = vmatpush1.xpose.msra.mxu0 %v444
        %464 = vmatprep.subr.mxu0 0.0
        %465 = vmatpush1.xpose.msra.mxu0 %v447
        %466 = vmatprep.subr.mxu0 0.0
        %467 = vmatpush1.xpose.msra.mxu0 %v450
        %468 = vmatprep.subr.mxu0 0.0
        %469 = vmatpush1.xpose.msra.mxu0 0.0
        %470 = vmatprep.subr.mxu0 0.0
        %471 = vmatpush1.xpose.msra.mxu0 0.0
        %472 = vmatprep.subr.mxu0 0.0
        %473 = vmatpush1.xpose.msra.mxu0 0.0
        %474 = vmatprep.subr.mxu0 0.0
        %475 = vmatpush1.xpose.msra.mxu0 0.0
        %476 = vmatprep.subr.mxu0 0.0
        %477 = vmatpush1.xpose.msra.mxu0 0.0
        %478 = vmatprep.subr.mxu0 0.0
        %479 = vmatpush1.xpose.msra.mxu0 0.0
        %480 = vmatprep.subr.mxu0 0.0
        %481 = vmatpush1.xpose.msra.mxu0 0.0
        %482 = vmatprep.subr.mxu0 0.0
        %483 = vmatpush1.xpose.msra.mxu0 0.0
        %484 = vmatprep.subr.mxu0 0.0
        %485 = vmatpush1.xpose.msra.mxu0 0.0
        %486 = vmatprep.subr.mxu0 0.0
        %487 = vmatpush1.xpose.msra.mxu0 0.0
        %488 = vmatprep.subr.mxu0 0.0
        %489 = vmatpush1.xpose.msra.mxu0 0.0
        %490 = vmatprep.subr.mxu0 0.0
        %491 = vmatpush1.xpose.msra.mxu0 0.0
        %492 = vmatprep.subr.mxu0 0.0
        %493 = vmatpush1.xpose.msra.mxu0 0.0
        %494 = vmatprep.subr.mxu0 0.0
        %495 = vmatpush1.xpose.msra.mxu0 0.0
        %496 = vmatprep.subr.mxu0 0.0
        %497 = vmatpush1.xpose.msra.mxu0 0.0
        %498 = vmatprep.subr.mxu0 0.0
        %499 = vmatpush1.xpose.msra.mxu0 0.0
        %500 = vmatprep.subr.mxu0 0.0
        %501 = vmatpush1.xpose.msra.mxu0 0.0
        %502 = vmatprep.subr.mxu0 0.0
        %503 = vmatpush1.xpose.msra.mxu0 0.0
        %504 = vmatprep.subr.mxu0 0.0
        %505 = vmatpush1.xpose.msra.mxu0 0.0
        %506 = vmatprep.subr.mxu0 0.0
        %507 = vmatpush1.xpose.msra.mxu0 0.0
        %508 = vmatprep.subr.mxu0 0.0
        %509 = vmatpush1.xpose.msra.mxu0 0.0
        %510 = vmatprep.subr.mxu0 0.0
        %511 = vmatpush1.xpose.msra.mxu0 0.0
        %512 = vmatprep.subr.mxu0 0.0
        %513 = vmatpush1.xpose.msra.mxu0 0.0
        %514 = vmatprep.subr.mxu0 0.0
        %515 = vmatpush1.xpose.msra.mxu0 0.0
        %516 = vmatprep.mubr.f32.mxu0 0.0
        %517 = vmatmul.mubr.f32.gmra.mrb[0].mxu0 %v417
        %v518 = vpop.f32.mrb[0].mxu0
        %v519 = vadd.f32 0.0, %v518
        %v520 = vpop.f32.mrb[0].mxu0
        %521 = vmatprep.mubr.f32.mxu0 0.0
        %522 = vmatmul.mubr.f32.gmra.mrb[0].mxu0 %v420
        %v523 = vpop.f32.mrb[0].mxu0
        %v524 = vadd.f32 0.0, %v523
        %v525 = vpop.f32.mrb[0].mxu0
        %526 = vmatprep.mubr.f32.mxu0 0.0
        %527 = vmatmul.mubr.f32.gmra.mrb[0].mxu0 %v423
        %v528 = vpop.f32.mrb[0].mxu0
        %v529 = vadd.f32 0.0, %v528
        %v530 = vpop.f32.mrb[0].mxu0
        %531 = vmatprep.mubr.f32.mxu0 0.0
        %532 = vmatmul.mubr.f32.gmra.mrb[0].mxu0 %v426
        %v533 = vpop.f32.mrb[0].mxu0
        %v534 = vadd.f32 0.0, %v533
        %v535 = vpop.f32.mrb[0].mxu0
        %536 = vdwg.mxu0
        %v537 = vld [vmem:[#allocation6] sm:$0xff]
        %v538 = vld [vmem:[#allocation6 + $0x8] sm:$0xff]
        %v539 = vld [vmem:[#allocation6 + $0x10] sm:$0xff]
        %v540 = vld [vmem:[#allocation6 + $0x18] sm:$0xff]
        %v541 = vld [vmem:[#allocation6 + $0x20] sm:$0xff]
        %v542 = vld [vmem:[#allocation6 + $0x28] sm:$0xff]
        %v543 = vld [vmem:[#allocation6 + $0x30] sm:$0xff]
        %v544 = vld [vmem:[#allocation6 + $0x38] sm:$0xff]
        %v545 = vld [vmem:[#allocation7] sm:$0x1]
        %vm546 = vcmask 516096
        %547 = vst.msk [vmem:[%s261] sm:$0x1] %vm546, %v545
        %v548 = vld [vmem:[#allocation7 + $0x1] sm:$0xff]
        %v549 = vld [vmem:[#allocation7 + $0x9] sm:$0xff]
        %v550 = vld [vmem:[#allocation7 + $0x11] sm:$0xff]
        %v551 = vld [vmem:[#allocation7 + $0x19] sm:$0xff]
        %v553 = vsel %vm274, %v519, 0
        %v556 = vsel %vm274, %v524, 0
        %v559 = vsel %vm274, %v529, 0
        %v562 = vsel %vm274, %v534, 0
        %564 = vmatprep.subr.mxu0 0.0
        %565 = vmatpush1.msra.mxu0 %v537
        %566 = vmatprep.subr.mxu0 0.0
        %567 = vmatpush1.msra.mxu0 %v538
        %568 = vmatprep.subr.mxu0 0.0
        %569 = vmatpush1.msra.mxu0 %v539
        %570 = vmatprep.subr.mxu0 0.0
        %571 = vmatpush1.msra.mxu0 %v540
        %572 = vmatprep.subr.mxu0 0.0
        %573 = vmatpush1.msra.mxu0 %v541
        %574 = vmatprep.subr.mxu0 0.0
        %575 = vmatpush1.msra.mxu0 %v542
        %576 = vmatprep.subr.mxu0 0.0
        %577 = vmatpush1.msra.mxu0 %v543
        %578 = vmatprep.subr.mxu0 0.0
        %579 = vmatpush1.msra.mxu0 %v544
        %580 = vmatprep.subr.mxu0 0.0
        %581 = vmatpush1.msra.mxu0 0.0
        %582 = vmatprep.subr.mxu0 0.0
        %583 = vmatpush1.msra.mxu0 0.0
        %584 = vmatprep.subr.mxu0 0.0
        %585 = vmatpush1.msra.mxu0 0.0
        %586 = vmatprep.subr.mxu0 0.0
        %587 = vmatpush1.msra.mxu0 0.0
        %588 = vmatprep.subr.mxu0 0.0
        %589 = vmatpush1.msra.mxu0 0.0
        %590 = vmatprep.subr.mxu0 0.0
        %591 = vmatpush1.msra.mxu0 0.0
        %592 = vmatprep.subr.mxu0 0.0
        %593 = vmatpush1.msra.mxu0 0.0
        %594 = vmatprep.subr.mxu0 0.0
        %595 = vmatpush1.msra.mxu0 0.0
        %596 = vmatprep.subr.mxu0 0.0
        %597 = vmatpush1.msra.mxu0 0.0
        %598 = vmatprep.subr.mxu0 0.0
        %599 = vmatpush1.msra.mxu0 0.0
        %600 = vmatprep.subr.mxu0 0.0
        %601 = vmatpush1.msra.mxu0 0.0
        %602 = vmatprep.subr.mxu0 0.0
        %603 = vmatpush1.msra.mxu0 0.0
        %604 = vmatprep.subr.mxu0 0.0
        %605 = vmatpush1.msra.mxu0 0.0
        %606 = vmatprep.subr.mxu0 0.0
        %607 = vmatpush1.msra.mxu0 0.0
        %608 = vmatprep.subr.mxu0 0.0
        %609 = vmatpush1.msra.mxu0 0.0
        %610 = vmatprep.subr.mxu0 0.0
        %611 = vmatpush1.msra.mxu0 0.0
        %612 = vmatprep.subr.mxu0 0.0
        %613 = vmatpush1.msra.mxu0 0.0
        %614 = vmatprep.subr.mxu0 0.0
        %615 = vmatpush1.msra.mxu0 0.0
        %616 = vmatprep.subr.mxu0 0.0
        %617 = vmatpush1.msra.mxu0 0.0
        %618 = vmatprep.subr.mxu0 0.0
        %619 = vmatpush1.msra.mxu0 0.0
        %620 = vmatprep.subr.mxu0 0.0
        %621 = vmatpush1.msra.mxu0 0.0
        %622 = vmatprep.subr.mxu0 0.0
        %623 = vmatpush1.msra.mxu0 0.0
        %624 = vmatprep.subr.mxu0 0.0
        %625 = vmatpush1.msra.mxu0 0.0
        %626 = vmatprep.subr.mxu0 0.0
        %627 = vmatpush1.msra.mxu0 0.0
        %628 = vmatprep.mubr.f32.mxu0 0.0
        %629 = vmatmul.mubr.f32.gmra.mrb[0].mxu0 %v553
        %v630 = vpop.f32.mrb[0].mxu0
        %v631 = vadd.f32 %v548, %v630
        %v632 = vpop.f32.mrb[0].mxu0
        %633 = vmatprep.mubr.f32.mxu0 0.0
        %634 = vmatmul.mubr.f32.gmra.mrb[0].mxu0 %v556
        %v635 = vpop.f32.mrb[0].mxu0
        %v636 = vadd.f32 %v549, %v635
        %v637 = vpop.f32.mrb[0].mxu0
        %638 = vmatprep.mubr.f32.mxu0 0.0
        %639 = vmatmul.mubr.f32.gmra.mrb[0].mxu0 %v559
        %v640 = vpop.f32.mrb[0].mxu0
        %v641 = vadd.f32 %v550, %v640
        %v642 = vpop.f32.mrb[0].mxu0
        %643 = vmatprep.mubr.f32.mxu0 0.0
        %644 = vmatmul.mubr.f32.gmra.mrb[0].mxu0 %v562
        %v645 = vpop.f32.mrb[0].mxu0
        %v646 = vadd.f32 %v551, %v645
        %v647 = vpop.f32.mrb[0].mxu0
        %648 = vdwg.mxu0
        %649 = vst.msk [vmem:[%s261 + $0x1] sm:$0xff] %vm274, %v631
        %650 = vst.msk [vmem:[%s261 + $0x9] sm:$0xff] %vm274, %v636
        %651 = vst.msk [vmem:[%s261 + $0x11] sm:$0xff] %vm274, %v641
        %652 = vst.msk [vmem:[%s261 + $0x19] sm:$0xff] %vm274, %v646
        %p653 = scmp.lt.s32.totalorder %s20, 1
        %s654 = scalar_select %p653, %s20, 1
        %s655 = smul.addr %s654, 5
        %s656 = smul.addr %s655, 8
        %s657 = scalar_lea.vmem %s4, %s656
        // Predicated region
        $region53: #{tpu_custom_call.1} parent=35 // pred_check
          %p658 = pneg %p127
        $region54: #{tpu_custom_call.1} parent=35 // pred_check_branch
          %660 = sbr.rel (%p658) target = $region56
        $region55: #{tpu_custom_call.1} parent=35 // pred_region
          _
        $region56: #{tpu_custom_call.1} parent=35 // pred_fallthru
          _
      $region36: #{tpu_custom_call.1} parent=5 // pred_fallthru
        _
      %p661 = scmp.le.s32.totalorder 2, %s15
      // Predicated region
      $region57: #{tpu_custom_call.1} parent=5 // pred_check
        %p662 = pneg %p661
      $region58: #{tpu_custom_call.1} parent=5 // pred_check_branch
        %664 = sbr.rel (%p662) target = $region60
      $region59: #{tpu_custom_call.1} parent=5 // pred_region
        %s665 = ssub.s32 %s15, 2
        // Predicated region
        $region61: #{tpu_custom_call.1} parent=59 // pred_check
          %p666 = pneg %p133
        $region62: #{tpu_custom_call.1} parent=59 // pred_check_branch
          %668 = sbr.rel (%p666) target = $region64
        $region63: #{tpu_custom_call.1} parent=59 // pred_region
          %p669 = scmp.lt.s32.totalorder %s21, 1
          %s670 = scalar_select %p669, %s21, 1
          %s671 = smul.addr %s670, 5
          %s672 = smul.addr %s671, 8
          %s673 = scalar_lea.vmem %s4, %s672
        $region64: #{tpu_custom_call.1} parent=59 // pred_fallthru
          _
      $region60: #{tpu_custom_call.1} parent=5 // pred_fallthru
        _
    $region6: #{tpu_custom_call.1} parent=1 // loop_footer
      %s19 = sadd.s32 1, %s15
    $region7: #{tpu_custom_call.1} parent=1 // loop_footer_branch
      %14 = sbr.rel target = $region3
    $region8: #{tpu_custom_call.1} parent=1 // loop_exit
      _
    %674 = vsyncpa [#allocation3], 1
    %s675 = scalar_lea.sflag [#allocation3], 1
    %676 = vsyncpa %s675, 1
    %677 = vsyncpa [#allocation5], 1
    %678 = vsyncpa [#allocation8], 1

</llo_original>
